<compile_context>
chip_gen: v7x
topology: tpu7x:2x2x1
jax: 0.10.0
libtpu: 0.0.40
codegen_flags: <defaults>
</compile_context>

<pallas_src>
import jax
import jax.numpy as jnp
import numpy as np
from jax.experimental import pallas as pl
from jax.experimental.pallas import tpu as pltpu


def _partial_sums_kernel(dx_ref, dy_ref, sq_ref, cnt_ref,
                         acc_dx2, acc_dy2, acc_cdx, acc_cdy):
    t = pl.program_id(1)
    nt = pl.num_programs(1)

    @pl.when(t == 0)
    def _init():
        acc_dx2[...] = jnp.zeros_like(acc_dx2)
        acc_dy2[...] = jnp.zeros_like(acc_dy2)
        acc_cdx[...] = jnp.zeros_like(acc_cdx)
        acc_cdy[...] = jnp.zeros_like(acc_cdy)

    # Upcast inside the kernel (no-op for f32; bandwidth win for bf16 inputs).
    dx = dx_ref[...].astype(jnp.float32)      # (Bt, C, HW)
    dy = dy_ref[...].astype(jnp.float32)
    dx_nan = jnp.isnan(dx)
    dy_nan = jnp.isnan(dy)
    dxm = jnp.where(dx_nan, 0.0, dx)          # mask reused for square + count
    dym = jnp.where(dy_nan, 0.0, dy)

    # Pure VPU accumulation; sum over the leading batch axis is vreg adds
    # (no cross-lane/sublane movement).  Counts accumulate exactly in int32.
    acc_dx2[...] += jnp.sum(dxm * dxm, axis=0)
    acc_dy2[...] += jnp.sum(dym * dym, axis=0)
    acc_cdx[...] += jnp.sum((~dx_nan).astype(jnp.int32), axis=0)
    acc_cdy[...] += jnp.sum((~dy_nan).astype(jnp.int32), axis=0)

    @pl.when(t == nt - 1)
    def _epilogue():
        # Single cross-lane (XLU) reduce per shard.  Channel weights and the
        # normalization are applied in the wrapper on these tiny partials.
        sq_ref[0, 0] = jnp.sum(acc_dx2[...], axis=-1, keepdims=True)
        sq_ref[0, 1] = jnp.sum(acc_dy2[...], axis=-1, keepdims=True)
        cnt_ref[0, 0] = jnp.sum(acc_cdx[...], axis=-1, keepdims=True)
        cnt_ref[0, 1] = jnp.sum(acc_cdy[...], axis=-1, keepdims=True)


def _choose_tiling(B, C, HW, itemsize, target_block_bytes=1 << 20):
    # Shard the batch across 2 TensorCores (v7x) when it divides evenly.
    ns = 2 if (B >= 2 and B % 2 == 0) else 1
    b_per_shard = B // ns
    bytes_per_batch = max(1, C * HW * itemsize)
    bt = max(1, min(b_per_shard, target_block_bytes // bytes_per_batch))
    while b_per_shard % bt:
        bt -= 1
    nb = b_per_shard // bt
    return ns, nb, bt


def model_var_cost(dx, dy, w_reg, w_obs, alpha_reg, alpha_obs):
    """dx, dy: (B, C, H, W). Returns the Model_Var_Cost loss (shape (1,))."""
    B, C, H, W = dx.shape
    HW = H * W
    dx3 = dx.reshape(B, C, HW)
    dy3 = dy.reshape(B, C, HW)
    ns, nb, bt = _choose_tiling(B, C, HW, dx3.dtype.itemsize)

    # VMEM budget: 2 inputs x 2 pipeline buffers x block + 4 accumulators.
    blk_bytes = bt * C * HW * dx3.dtype.itemsize
    acc_bytes = 4 * C * HW * 4
    vmem_limit = int(min(max(2 * (2 * 2 * blk_bytes + acc_bytes) + (2 << 20),
                             16 << 20), 40 << 20))
    # TODO(synk): for very large spatial grids (C*HW*4 of several MiB) the
    # (C, HW) accumulators should additionally be tiled along HW.

    grid_spec = pltpu.PrefetchScalarGridSpec(
        num_scalar_prefetch=0,
        grid=(ns, nb),
        in_specs=[
            pl.BlockSpec((bt, C, HW), lambda s, t: (s * nb + t, 0, 0)),   # dx
            pl.BlockSpec((bt, C, HW), lambda s, t: (s * nb + t, 0, 0)),   # dy
        ],
        out_specs=[
            pl.BlockSpec((1, 2, C, 1), lambda s, t: (s, 0, 0, 0)),  # sum sq
            pl.BlockSpec((1, 2, C, 1), lambda s, t: (s, 0, 0, 0)),  # counts
        ],
        scratch_shapes=[
            pltpu.VMEM((C, HW), jnp.float32),   # acc dx**2
            pltpu.VMEM((C, HW), jnp.float32),   # acc dy**2
            pltpu.VMEM((C, HW), jnp.int32),     # acc count dx
            pltpu.VMEM((C, HW), jnp.int32),     # acc count dy
        ],
    )

    sq, cnt = pl.pallas_call(
        _partial_sums_kernel,
        out_shape=(jax.ShapeDtypeStruct((ns, 2, C, 1), jnp.float32),
                   jax.ShapeDtypeStruct((ns, 2, C, 1), jnp.int32)),
        grid_spec=grid_spec,
        compiler_params=pltpu.CompilerParams(
            dimension_semantics=("parallel", "arbitrary"),
            vmem_limit_bytes=vmem_limit),
    )(dx3, dy3)

    # Combine per-shard partials, apply channel weights (after the lane
    # reduce) and normalize — tiny (2, C) arrays, done in plain JAX.
    sq = jnp.sum(sq, axis=0)[..., 0]       # (2, C) float32
    cnt = jnp.sum(cnt, axis=0)[..., 0]     # (2, C) int32, exact counts
    wreg2 = jnp.asarray(w_reg, jnp.float32).reshape(C) ** 2
    wobs2 = jnp.asarray(w_obs, jnp.float32).reshape(C) ** 2
    c_f = jnp.float32(C)
    norm_reg = jnp.sum(sq[0] * wreg2) * c_f / jnp.sum(cnt[0]).astype(jnp.float32)
    norm_obs = jnp.sum(sq[1] * wobs2) * c_f / jnp.sum(cnt[1]).astype(jnp.float32)
    a_reg = jnp.asarray(alpha_reg, jnp.float32).reshape(-1)
    a_obs = jnp.asarray(alpha_obs, jnp.float32).reshape(-1)
    # TODO(synk): epsReg / epsObs are passed to the norms in PyTorch but are
    # unused by Model_WeightedL2Norm, so they do not enter the computation.
    return a_reg ** 2 * norm_reg + a_obs ** 2 * norm_obs


# ---------------- pure-JAX reference (mirrors the PyTorch code) -------------
def weighted_l2_norm_ref(x, w):
    loss = jnp.nansum(x ** 2, axis=3)
    loss = jnp.nansum(loss, axis=2)
    loss = jnp.nansum(loss, axis=0)
    loss = jnp.nansum(loss * w)
    return loss / (jnp.sum(~jnp.isnan(x)) / x.shape[1])


if __name__ == "__main__":
    B, C, H, W = 2, 4, 16, 16          # ShapeData[0] = C
    key = jax.random.PRNGKey(0)
    k1, k2 = jax.random.split(key)
    dx = jax.random.normal(k1, (B, C, H, W), dtype=jnp.float32)
    dy = jax.random.normal(k2, (B, C, H, W), dtype=jnp.float32)
    # A few NaNs to exercise the nansum / non-NaN-count path.
    dx = dx.at[0, 1, 3, 5].set(jnp.nan)
    dy = dy.at[1, 2, 0, 7].set(jnp.nan)

    # Parameters as in Model_Var_Cost.__init__ (dim_obs=1, dim_obs_channel=[0]),
    # made non-uniform so the weighted path is actually tested.
    dim_obs = 1
    alphaObs = 1.3 * jnp.ones((dim_obs, 1), jnp.float32)
    alphaReg = jnp.array([0.7], jnp.float32)
    WObs = 1.0 + 0.1 * jnp.arange(dim_obs * C, dtype=jnp.float32).reshape(dim_obs, C)
    WReg = 1.0 + 0.05 * jnp.arange(C, dtype=jnp.float32)

    loss = model_var_cost(dx, dy, WReg, WObs[0], alphaReg, alphaObs[0])
    loss = jax.block_until_ready(loss)

    ref = (alphaReg ** 2 * weighted_l2_norm_ref(dx, WReg ** 2)
           + alphaObs[0] ** 2 * weighted_l2_norm_ref(dy, WObs[0] ** 2))
    np.testing.assert_allclose(np.asarray(loss), np.asarray(ref),
                               rtol=1e-5, atol=1e-5)
    print("KERNEL_OK")
</pallas_src>

<mosaic_0001>
module attributes {stable_mosaic.version = 11 : i64} {
  func.func @_partial_sums_kernel(%arg0: i32, %arg1: i32, %arg2: memref<1x4x256xf32, #tpu.memory_space<vmem>>, %arg3: memref<1x4x256xf32, #tpu.memory_space<vmem>>, %arg4: memref<1x2x4x1xf32, #tpu.memory_space<vmem>>, %arg5: memref<1x2x4x1xi32, #tpu.memory_space<vmem>>, %arg6: memref<4x256xf32, #tpu.memory_space<vmem>>, %arg7: memref<4x256xf32, #tpu.memory_space<vmem>>, %arg8: memref<4x256xi32, #tpu.memory_space<vmem>>, %arg9: memref<4x256xi32, #tpu.memory_space<vmem>>) attributes {dimension_semantics = [#tpu.dimension_semantics<parallel>, #tpu.dimension_semantics<arbitrary>], iteration_bounds = array<i64: 2, 1>, scalar_prefetch = 0 : i64, scratch_operands = 4 : i64, tpu.core_type = #tpu.core_type<tc>, window_params = [{transform_indices = @transform_0, window_bounds = array<i64: 1, 4, 256>}, {transform_indices = @transform_1, window_bounds = array<i64: 1, 4, 256>}, {transform_indices = @transform_2, window_bounds = array<i64: 1, 2, 4, 1>}, {transform_indices = @transform_3, window_bounds = array<i64: 1, 2, 4, 1>}]} {
    %c0_i32 = arith.constant 0 : i32
    %0 = arith.cmpi eq, %arg1, %c0_i32 : i32
    %1 = arith.extui %0 : i1 to i32
    %c0_i32_0 = arith.constant 0 : i32
    %2 = arith.cmpi ne, %1, %c0_i32_0 : i32
    scf.if %2 {
      %cst_31 = arith.constant 0.000000e+00 : f32
      %36 = vector.broadcast %cst_31 : f32 to vector<4x256xf32>
      %c0_32 = arith.constant 0 : index
      %c0_33 = arith.constant 0 : index
      %37 = vector.load %arg6[%c0_32, %c0_33] : memref<4x256xf32, #tpu.memory_space<vmem>>, vector<4x256xf32>
      tpu.vector_store %arg6[%c0_32, %c0_33], %36 {strides = array<i32>} : memref<4x256xf32, #tpu.memory_space<vmem>>, vector<4x256xf32>,
      %cst_34 = arith.constant 0.000000e+00 : f32
      %38 = vector.broadcast %cst_34 : f32 to vector<4x256xf32>
      %c0_35 = arith.constant 0 : index
      %c0_36 = arith.constant 0 : index
      %39 = vector.load %arg7[%c0_35, %c0_36] : memref<4x256xf32, #tpu.memory_space<vmem>>, vector<4x256xf32>
      tpu.vector_store %arg7[%c0_35, %c0_36], %38 {strides = array<i32>} : memref<4x256xf32, #tpu.memory_space<vmem>>, vector<4x256xf32>,
      %c0_i32_37 = arith.constant 0 : i32
      %40 = vector.broadcast %c0_i32_37 : i32 to vector<4x256xi32>
      %c0_38 = arith.constant 0 : index
      %c0_39 = arith.constant 0 : index
      %41 = vector.load %arg8[%c0_38, %c0_39] : memref<4x256xi32, #tpu.memory_space<vmem>>, vector<4x256xi32>
      tpu.vector_store %arg8[%c0_38, %c0_39], %40 {strides = array<i32>} : memref<4x256xi32, #tpu.memory_space<vmem>>, vector<4x256xi32>,
      %c0_i32_40 = arith.constant 0 : i32
      %42 = vector.broadcast %c0_i32_40 : i32 to vector<4x256xi32>
      %c0_41 = arith.constant 0 : index
      %c0_42 = arith.constant 0 : index
      %43 = vector.load %arg9[%c0_41, %c0_42] : memref<4x256xi32, #tpu.memory_space<vmem>>, vector<4x256xi32>
      tpu.vector_store %arg9[%c0_41, %c0_42], %42 {strides = array<i32>} : memref<4x256xi32, #tpu.memory_space<vmem>>, vector<4x256xi32>,
    } else {
    }
    %c0 = arith.constant 0 : index
    %c0_1 = arith.constant 0 : index
    %c0_2 = arith.constant 0 : index
    %3 = vector.load %arg2[%c0, %c0_1, %c0_2] : memref<1x4x256xf32, #tpu.memory_space<vmem>>, vector<1x4x256xf32>
    %c0_3 = arith.constant 0 : index
    %c0_4 = arith.constant 0 : index
    %c0_5 = arith.constant 0 : index
    %4 = vector.load %arg3[%c0_3, %c0_4, %c0_5] : memref<1x4x256xf32, #tpu.memory_space<vmem>>, vector<1x4x256xf32>
    %5 = arith.cmpf one, %3, %3 : vector<1x4x256xf32>
    %6 = arith.cmpf one, %4, %4 : vector<1x4x256xf32>
    %cst = arith.constant 0.000000e+00 : f32
    %7 = vector.broadcast %cst : f32 to vector<1x4x256xf32>
    %8 = arith.select %5, %7, %3 : vector<1x4x256xi1>, vector<1x4x256xf32>
    %cst_6 = arith.constant 0.000000e+00 : f32
    %9 = vector.broadcast %cst_6 : f32 to vector<1x4x256xf32>
    %10 = arith.select %6, %9, %4 : vector<1x4x256xi1>, vector<1x4x256xf32>
    %c0_7 = arith.constant 0 : index
    %c0_8 = arith.constant 0 : index
    %11 = vector.load %arg6[%c0_7, %c0_8] : memref<4x256xf32, #tpu.memory_space<vmem>>, vector<4x256xf32>
    %12 = arith.mulf %8, %8 : vector<1x4x256xf32>
    %cst_9 = arith.constant dense<0.000000e+00> : vector<4x256xf32>
    %13 = vector.multi_reduction <add>, %12, %cst_9 [0] : vector<1x4x256xf32> to vector<4x256xf32>
    %14 = arith.addf %11, %13 : vector<4x256xf32>
    %c0_10 = arith.constant 0 : index
    %c0_11 = arith.constant 0 : index
    %15 = vector.load %arg6[%c0_10, %c0_11] : memref<4x256xf32, #tpu.memory_space<vmem>>, vector<4x256xf32>
    tpu.vector_store %arg6[%c0_10, %c0_11], %14 {strides = array<i32>} : memref<4x256xf32, #tpu.memory_space<vmem>>, vector<4x256xf32>,
    %c0_12 = arith.constant 0 : index
    %c0_13 = arith.constant 0 : index
    %16 = vector.load %arg7[%c0_12, %c0_13] : memref<4x256xf32, #tpu.memory_space<vmem>>, vector<4x256xf32>
    %17 = arith.mulf %10, %10 : vector<1x4x256xf32>
    %cst_14 = arith.constant dense<0.000000e+00> : vector<4x256xf32>
    %18 = vector.multi_reduction <add>, %17, %cst_14 [0] : vector<1x4x256xf32> to vector<4x256xf32>
    %19 = arith.addf %16, %18 : vector<4x256xf32>
    %c0_15 = arith.constant 0 : index
    %c0_16 = arith.constant 0 : index
    %20 = vector.load %arg7[%c0_15, %c0_16] : memref<4x256xf32, #tpu.memory_space<vmem>>, vector<4x256xf32>
    tpu.vector_store %arg7[%c0_15, %c0_16], %19 {strides = array<i32>} : memref<4x256xf32, #tpu.memory_space<vmem>>, vector<4x256xf32>,
    %c0_17 = arith.constant 0 : index
    %c0_18 = arith.constant 0 : index
    %21 = vector.load %arg8[%c0_17, %c0_18] : memref<4x256xi32, #tpu.memory_space<vmem>>, vector<4x256xi32>
    %cst_19 = arith.constant dense<true> : vector<1x4x256xi1>
    %22 = arith.xori %5, %cst_19 : vector<1x4x256xi1>
    %23 = arith.extui %22 : vector<1x4x256xi1> to vector<1x4x256xi32>
    %cst_20 = arith.constant dense<0> : vector<4x256xi32>
    %24 = vector.multi_reduction <add>, %23, %cst_20 [0] : vector<1x4x256xi32> to vector<4x256xi32>
    %25 = arith.addi %21, %24 : vector<4x256xi32>
    %c0_21 = arith.constant 0 : index
    %c0_22 = arith.constant 0 : index
    %26 = vector.load %arg8[%c0_21, %c0_22] : memref<4x256xi32, #tpu.memory_space<vmem>>, vector<4x256xi32>
    tpu.vector_store %arg8[%c0_21, %c0_22], %25 {strides = array<i32>} : memref<4x256xi32, #tpu.memory_space<vmem>>, vector<4x256xi32>,
    %c0_23 = arith.constant 0 : index
    %c0_24 = arith.constant 0 : index
    %27 = vector.load %arg9[%c0_23, %c0_24] : memref<4x256xi32, #tpu.memory_space<vmem>>, vector<4x256xi32>
    %cst_25 = arith.constant dense<true> : vector<1x4x256xi1>
    %28 = arith.xori %6, %cst_25 : vector<1x4x256xi1>
    %29 = arith.extui %28 : vector<1x4x256xi1> to vector<1x4x256xi32>
    %cst_26 = arith.constant dense<0> : vector<4x256xi32>
    %30 = vector.multi_reduction <add>, %29, %cst_26 [0] : vector<1x4x256xi32> to vector<4x256xi32>
    %31 = arith.addi %27, %30 : vector<4x256xi32>
    %c0_27 = arith.constant 0 : index
    %c0_28 = arith.constant 0 : index
    %32 = vector.load %arg9[%c0_27, %c0_28] : memref<4x256xi32, #tpu.memory_space<vmem>>, vector<4x256xi32>
    tpu.vector_store %arg9[%c0_27, %c0_28], %31 {strides = array<i32>} : memref<4x256xi32, #tpu.memory_space<vmem>>, vector<4x256xi32>,
    %c0_i32_29 = arith.constant 0 : i32
    %33 = arith.cmpi eq, %arg1, %c0_i32_29 : i32
    %34 = arith.extui %33 : i1 to i32
    %c0_i32_30 = arith.constant 0 : i32
    %35 = arith.cmpi ne, %34, %c0_i32_30 : i32
    scf.if %35 {
      %c0_31 = arith.constant 0 : index
      %c0_32 = arith.constant 0 : index
      %36 = vector.load %arg6[%c0_31, %c0_32] : memref<4x256xf32, #tpu.memory_space<vmem>>, vector<4x256xf32>
      %cst_33 = arith.constant dense<0.000000e+00> : vector<4xf32>
      %37 = vector.multi_reduction <add>, %36, %cst_33 [1] : vector<4x256xf32> to vector<4xf32>
      %38 = vector.shape_cast %37 : vector<4xf32> to vector<4x1xf32>
      %c0_34 = arith.constant 0 : index
      %c0_35 = arith.constant 0 : index
      %c0_36 = arith.constant 0 : index
      %c0_37 = arith.constant 0 : index
      %39 = vector.load %arg4[%c0_34, %c0_35, %c0_36, %c0_37] : memref<1x2x4x1xf32, #tpu.memory_space<vmem>>, vector<1x1x4x1xf32>
      %40 = vector.shape_cast %39 : vector<1x1x4x1xf32> to vector<4x1xf32>
      %41 = vector.shape_cast %38 : vector<4x1xf32> to vector<1x1x4x1xf32>
      tpu.vector_store %arg4[%c0_34, %c0_35, %c0_36, %c0_37], %41 {strides = array<i32>} : memref<1x2x4x1xf32, #tpu.memory_space<vmem>>, vector<1x1x4x1xf32>,
      %c0_38 = arith.constant 0 : index
      %c0_39 = arith.constant 0 : index
      %42 = vector.load %arg7[%c0_38, %c0_39] : memref<4x256xf32, #tpu.memory_space<vmem>>, vector<4x256xf32>
      %cst_40 = arith.constant dense<0.000000e+00> : vector<4xf32>
      %43 = vector.multi_reduction <add>, %42, %cst_40 [1] : vector<4x256xf32> to vector<4xf32>
      %44 = vector.shape_cast %43 : vector<4xf32> to vector<4x1xf32>
      %c0_41 = arith.constant 0 : index
      %c1 = arith.constant 1 : index
      %c0_42 = arith.constant 0 : index
      %c0_43 = arith.constant 0 : index
      %45 = vector.load %arg4[%c0_41, %c1, %c0_42, %c0_43] : memref<1x2x4x1xf32, #tpu.memory_space<vmem>>, vector<1x1x4x1xf32>
      %46 = vector.shape_cast %45 : vector<1x1x4x1xf32> to vector<4x1xf32>
      %47 = vector.shape_cast %44 : vector<4x1xf32> to vector<1x1x4x1xf32>
      tpu.vector_store %arg4[%c0_41, %c1, %c0_42, %c0_43], %47 {strides = array<i32>} : memref<1x2x4x1xf32, #tpu.memory_space<vmem>>, vector<1x1x4x1xf32>,
      %c0_44 = arith.constant 0 : index
      %c0_45 = arith.constant 0 : index
      %48 = vector.load %arg8[%c0_44, %c0_45] : memref<4x256xi32, #tpu.memory_space<vmem>>, vector<4x256xi32>
      %cst_46 = arith.constant dense<0> : vector<4xi32>
      %49 = vector.multi_reduction <add>, %48, %cst_46 [1] : vector<4x256xi32> to vector<4xi32>
      %50 = vector.shape_cast %49 : vector<4xi32> to vector<4x1xi32>
      %c0_47 = arith.constant 0 : index
      %c0_48 = arith.constant 0 : index
      %c0_49 = arith.constant 0 : index
      %c0_50 = arith.constant 0 : index
      %51 = vector.load %arg5[%c0_47, %c0_48, %c0_49, %c0_50] : memref<1x2x4x1xi32, #tpu.memory_space<vmem>>, vector<1x1x4x1xi32>
      %52 = vector.shape_cast %51 : vector<1x1x4x1xi32> to vector<4x1xi32>
      %53 = vector.shape_cast %50 : vector<4x1xi32> to vector<1x1x4x1xi32>
      tpu.vector_store %arg5[%c0_47, %c0_48, %c0_49, %c0_50], %53 {strides = array<i32>} : memref<1x2x4x1xi32, #tpu.memory_space<vmem>>, vector<1x1x4x1xi32>,
      %c0_51 = arith.constant 0 : index
      %c0_52 = arith.constant 0 : index
      %54 = vector.load %arg9[%c0_51, %c0_52] : memref<4x256xi32, #tpu.memory_space<vmem>>, vector<4x256xi32>
      %cst_53 = arith.constant dense<0> : vector<4xi32>
      %55 = vector.multi_reduction <add>, %54, %cst_53 [1] : vector<4x256xi32> to vector<4xi32>
      %56 = vector.shape_cast %55 : vector<4xi32> to vector<4x1xi32>
      %c0_54 = arith.constant 0 : index
      %c1_55 = arith.constant 1 : index
      %c0_56 = arith.constant 0 : index
      %c0_57 = arith.constant 0 : index
      %57 = vector.load %arg5[%c0_54, %c1_55, %c0_56, %c0_57] : memref<1x2x4x1xi32, #tpu.memory_space<vmem>>, vector<1x1x4x1xi32>
      %58 = vector.shape_cast %57 : vector<1x1x4x1xi32> to vector<4x1xi32>
      %59 = vector.shape_cast %56 : vector<4x1xi32> to vector<1x1x4x1xi32>
      tpu.vector_store %arg5[%c0_54, %c1_55, %c0_56, %c0_57], %59 {strides = array<i32>} : memref<1x2x4x1xi32, #tpu.memory_space<vmem>>, vector<1x1x4x1xi32>,
    } else {
    }
    return
  }
  func.func @transform_0(%arg0: i32, %arg1: i32) -> (i32, i32, i32) {
    %c1_i32 = arith.constant 1 : i32
    %0 = arith.muli %arg0, %c1_i32 : i32
    %1 = arith.addi %0, %arg1 : i32
    %c0_i32 = arith.constant 0 : i32
    %c0_i32_0 = arith.constant 0 : i32
    %c0_i32_1 = arith.constant 0 : i32
    return %1, %c0_i32, %c0_i32_0 : i32, i32, i32
  }
  func.func @transform_1(%arg0: i32, %arg1: i32) -> (i32, i32, i32) {
    %c1_i32 = arith.constant 1 : i32
    %0 = arith.muli %arg0, %c1_i32 : i32
    %1 = arith.addi %0, %arg1 : i32
    %c0_i32 = arith.constant 0 : i32
    %c0_i32_0 = arith.constant 0 : i32
    %c0_i32_1 = arith.constant 0 : i32
    return %1, %c0_i32, %c0_i32_0 : i32, i32, i32
  }
  func.func @transform_2(%arg0: i32, %arg1: i32) -> (i32, i32, i32, i32) {
    %c0_i32 = arith.constant 0 : i32
    %c0_i32_0 = arith.constant 0 : i32
    %c0_i32_1 = arith.constant 0 : i32
    %c0_i32_2 = arith.constant 0 : i32
    return %arg0, %c0_i32, %c0_i32_0, %c0_i32_1 : i32, i32, i32, i32
  }
  func.func @transform_3(%arg0: i32, %arg1: i32) -> (i32, i32, i32, i32) {
    %c0_i32 = arith.constant 0 : i32
    %c0_i32_0 = arith.constant 0 : i32
    %c0_i32_1 = arith.constant 0 : i32
    %c0_i32_2 = arith.constant 0 : i32
    return %arg0, %c0_i32, %c0_i32_0, %c0_i32_1 : i32, i32, i32, i32
  }
}

</mosaic_0001>

<llo_original>
// kernel: tpu_custom_call.1
$region0: #{tpu_custom_call.1}
  #allocation0 [shape = 'u32[]', space=smem, size = 0x4, offset = 0x4, fixed_abs, tag = 'smem constant byte address 0x4 - core index']
  #allocation1 [shape = 'u32[144,128]{1,0:T(1,128)}', space=vmem, size = 0x12000, scoped, tag = 'internal scratch']
  #allocation2 [shape = 'f32[4,256]{1,0:T(4,128)}', space=vmem, size = 0x1000, scoped, tag = 'scratch operand']
  #allocation3 [shape = 'f32[4,256]{1,0:T(4,128)}', space=vmem, size = 0x1000, scoped, tag = 'scratch operand']
  #allocation4 [shape = 's32[4,256]{1,0:T(4,128)}', space=vmem, size = 0x1000, scoped, tag = 'scratch operand']
  #allocation5 [shape = 's32[4,256]{1,0:T(4,128)}', space=vmem, size = 0x1000, scoped, tag = 'scratch operand']
  %s0 = inlined_call_operand.hbm [shape: f32[2,4,256], index: 0, kind: input, shape index: {}]
  %s1 = inlined_call_operand.hbm [shape: f32[2,4,256], index: 1, kind: input, shape index: {}]
  %s2 = inlined_call_operand.vmem [shape: f32[2,2,4,1], index: 2, kind: output, shape index: {0}]
  %s3 = inlined_call_operand.vmem [shape: s32[2,2,4,1], index: 3, kind: output, shape index: {1}]
  %4 = xla_tuple %s2, %s3
  %s5 = sld [smem:[#allocation0]]
  $region65: #{tpu_custom_call.1} parent=0
    _
  %s7 = ssub.s32 1, %s5
  %s8 = scalar_select 0, %s7, %s5
  $region1: #{tpu_custom_call.1} parent=0
    #allocation6 [shape = 'u8[8192]{0}', space=vmem, size = 0x2000, scoped, tag = 'input window, operand 0']
    #allocation7 [shape = 's32[2]{0}', space=sflag, size = 0x8, scoped, tag = 'scoped memory for tpu_custom_call.1']
    #allocation8 [shape = 'u8[8192]{0}', space=vmem, size = 0x2000, scoped, tag = 'input window, operand 1']
    #allocation9 [shape = 's32[2]{0}', space=sflag, size = 0x8, scoped, tag = 'scoped memory for tpu_custom_call.1']
    %9 = vsyncpa [#allocation7], 0
    %s10 = scalar_lea.sflag [#allocation7], 1
    %11 = vsyncpa %s10, 0
    %12 = vsyncpa [#allocation9], 0
    %s13 = scalar_lea.sflag [#allocation9], 1
    %14 = vsyncpa %s13, 0
    loop: start=0, step=1, limit=4
    $region2: #{tpu_custom_call.1} parent=1 // loop_pre_header
      _
    $region3: #{tpu_custom_call.1} parent=1 // loop_header
      %s16 = sphi 0, %s20
      %p17 = scmp.ge.s32.totalorder %s16, 4
      %s23 = sphi 0, %s35
      %s24 = sphi 0, %s31
      %s25 = sphi 0, %s23
      %s26 = sphi 0, %s24
      %s27 = sphi 0, %s25
      %s28 = sphi 0, %s26
      %s40 = sphi 0, %s42
      %s43 = sphi 0, %s40
      %s44 = sphi 0, %s43
      %s60 = sphi 0, %s44
      %s68 = sphi 0, %s70
      %s71 = sphi 0, %s68
      %s72 = sphi 0, %s71
      %s88 = sphi 0, %s72
      %s94 = sphi 0, %s96
      %s97 = sphi 0, %s94
      %s98 = sphi 0, %s97
      %s114 = sphi 0, %s98
      %s120 = sphi 0, %s122
      %s123 = sphi 0, %s120
      %s124 = sphi 0, %s123
      %s140 = sphi 0, %s124
    $region4: #{tpu_custom_call.1} parent=1 // loop_header_branch
      %19 = sbr.rel (%p17) target = $region8
    $region5: #{tpu_custom_call.1} parent=1 // loop_body
      %s21 = ssub.s32 %s16, 1
      %s22 = ssub.s32 %s16, 2
      %s29 = sadd.s32 1, %s24
      %p30 = scmp.ge.s32.totalorder %s29, 1
      %s31 = scalar_select %p30, 0, %s29
      %s32 = sadd.s32 1, %s23
      %s33 = scalar_select %p30, %s32, %s23
      %p34 = scmp.ge.s32.totalorder %s33, 2
      %s35 = scalar_select %p34, 0, %s33
      %s36 = sadd.s32 %s23, %s24
      %s37 = sadd.s32 %s35, %s31
      %s38 = ssub.s32 %s36, %s37
      %p39 = scmp.eq.s32.totalorder %s38, 0
      %s41 = sadd.s32 %s40, 1
      %s42 = scalar_select %p39, %s40, %s41
      %p45 = pneg %p39
      %p46 = scmp.eq.s32.totalorder %s16, 1
      %p47 = por %p45, %p46
      %p48 = scmp.ne.s32.totalorder %s40, %s43
      %p49 = scmp.eq.s32.totalorder %s16, 0
      %p50 = por %p48, %p49
      %p51 = scmp.ne.s32.totalorder %s40, %s43
      %p52 = scmp.eq.s32.totalorder %s21, 1
      %p53 = por %p51, %p52
      %p54 = scmp.ne.s32.totalorder %s43, %s44
      %p55 = scmp.eq.s32.totalorder %s21, 0
      %p56 = por %p54, %p55
      %p57 = scmp.ne.s32.totalorder %s43, %s44
      %p58 = scmp.eq.s32.totalorder %s22, 1
      %p59 = por %p57, %p58
      %p61 = scmp.ne.s32.totalorder %s44, %s60
      %p62 = scmp.eq.s32.totalorder %s22, 0
      %p63 = por %p61, %p62
      %s64 = sadd.s32 %s23, %s24
      %s65 = sadd.s32 %s35, %s31
      %s66 = ssub.s32 %s64, %s65
      %p67 = scmp.eq.s32.totalorder %s66, 0
      %s69 = sadd.s32 %s68, 1
      %s70 = scalar_select %p67, %s68, %s69
      %p73 = pneg %p67
      %p74 = scmp.eq.s32.totalorder %s16, 1
      %p75 = por %p73, %p74
      %p76 = scmp.ne.s32.totalorder %s68, %s71
      %p77 = scmp.eq.s32.totalorder %s16, 0
      %p78 = por %p76, %p77
      %p79 = scmp.ne.s32.totalorder %s68, %s71
      %p80 = scmp.eq.s32.totalorder %s21, 1
      %p81 = por %p79, %p80
      %p82 = scmp.ne.s32.totalorder %s71, %s72
      %p83 = scmp.eq.s32.totalorder %s21, 0
      %p84 = por %p82, %p83
      %p85 = scmp.ne.s32.totalorder %s71, %s72
      %p86 = scmp.eq.s32.totalorder %s22, 1
      %p87 = por %p85, %p86
      %p89 = scmp.ne.s32.totalorder %s72, %s88
      %p90 = scmp.eq.s32.totalorder %s22, 0
      %p91 = por %p89, %p90
      %s92 = ssub.s32 %s23, %s35
      %p93 = scmp.eq.s32.totalorder %s92, 0
      %s95 = sadd.s32 %s94, 1
      %s96 = scalar_select %p93, %s94, %s95
      %p99 = pneg %p93
      %p100 = scmp.eq.s32.totalorder %s16, 1
      %p101 = por %p99, %p100
      %p102 = scmp.ne.s32.totalorder %s94, %s97
      %p103 = scmp.eq.s32.totalorder %s16, 0
      %p104 = por %p102, %p103
      %p105 = scmp.ne.s32.totalorder %s94, %s97
      %p106 = scmp.eq.s32.totalorder %s21, 1
      %p107 = por %p105, %p106
      %p108 = scmp.ne.s32.totalorder %s97, %s98
      %p109 = scmp.eq.s32.totalorder %s21, 0
      %p110 = por %p108, %p109
      %p111 = scmp.ne.s32.totalorder %s97, %s98
      %p112 = scmp.eq.s32.totalorder %s22, 1
      %p113 = por %p111, %p112
      %p115 = scmp.ne.s32.totalorder %s98, %s114
      %p116 = scmp.eq.s32.totalorder %s22, 0
      %p117 = por %p115, %p116
      %s118 = ssub.s32 %s23, %s35
      %p119 = scmp.eq.s32.totalorder %s118, 0
      %s121 = sadd.s32 %s120, 1
      %s122 = scalar_select %p119, %s120, %s121
      %p125 = pneg %p119
      %p126 = scmp.eq.s32.totalorder %s16, 1
      %p127 = por %p125, %p126
      %p128 = scmp.ne.s32.totalorder %s120, %s123
      %p129 = scmp.eq.s32.totalorder %s16, 0
      %p130 = por %p128, %p129
      %p131 = scmp.ne.s32.totalorder %s120, %s123
      %p132 = scmp.eq.s32.totalorder %s21, 1
      %p133 = por %p131, %p132
      %p134 = scmp.ne.s32.totalorder %s123, %s124
      %p135 = scmp.eq.s32.totalorder %s21, 0
      %p136 = por %p134, %p135
      %p137 = scmp.ne.s32.totalorder %s123, %s124
      %p138 = scmp.eq.s32.totalorder %s22, 1
      %p139 = por %p137, %p138
      %p141 = scmp.ne.s32.totalorder %s124, %s140
      %p142 = scmp.eq.s32.totalorder %s22, 0
      %p143 = por %p141, %p142
      %p144 = scmp.le.s32.totalorder 1, %s16
      %p145 = scmp.lt.s32.totalorder %s16, 3
      %p146 = pnand %p144, %p145
      %p147 = pneg %p146
      // Predicated region
      $region9: #{tpu_custom_call.1} parent=5 // pred_check
        _
      $region10: #{tpu_custom_call.1} parent=5 // pred_check_branch
        %149 = sbr.rel (%p146) target = $region12
      $region11: #{tpu_custom_call.1} parent=5 // pred_region
        %s150 = ssub.s32 %s16, 1
      $region12: #{tpu_custom_call.1} parent=5 // pred_fallthru
        _
      %p151 = scmp.lt.s32.totalorder %s16, 2
      // Predicated region
      $region13: #{tpu_custom_call.1} parent=5 // pred_check
        %p152 = pneg %p151
      $region14: #{tpu_custom_call.1} parent=5 // pred_check_branch
        %154 = sbr.rel (%p152) target = $region16
      $region15: #{tpu_custom_call.1} parent=5 // pred_region
        // Predicated region
        $region17: #{tpu_custom_call.1} parent=15 // pred_check
          %p155 = pneg %p50
        $region18: #{tpu_custom_call.1} parent=15 // pred_check_branch
          %157 = sbr.rel (%p155) target = $region20
        $region19: #{tpu_custom_call.1} parent=15 // pred_region
          %s158 = sand.u32 %s40, 1
          %s159 = scalar_lea.sflag [#allocation7], %s158
          %s160 = sand.u32 %s40, 1
          %s161 = smul.addr %s160, 8
          %s162 = scalar_lea.vmem [#allocation6], %s161
          %s163 = sadd.s32 %s23, %s24
          %s165 = ssub.s32 128, 128
          %166 = vsyncadd %s159, %s165
          %s167 = smul.addr %s163, 2
          %s168 = smul.addr %s167, 64
          %s169 = scalar_lea.hbm %s0, %s168
          %s171 = sshll.u32 %s162, 4
          %s172 = int_to_ptr.vmem [resolvable:$true] %s171
          %174 = dma.hbm_to_vmem [thread:$0]  %s169, 128, %s172, %s159
        $region20: #{tpu_custom_call.1} parent=15 // pred_fallthru
          _
        // Predicated region
        $region21: #{tpu_custom_call.1} parent=15 // pred_check
          %p175 = pneg %p78
        $region22: #{tpu_custom_call.1} parent=15 // pred_check_branch
          %177 = sbr.rel (%p175) target = $region24
        $region23: #{tpu_custom_call.1} parent=15 // pred_region
          %s178 = sand.u32 %s68, 1
          %s179 = scalar_lea.sflag [#allocation9], %s178
          %s180 = sand.u32 %s68, 1
          %s181 = smul.addr %s180, 8
          %s182 = scalar_lea.vmem [#allocation8], %s181
          %s183 = sadd.s32 %s23, %s24
          %s185 = ssub.s32 128, 128
          %186 = vsyncadd %s179, %s185
          %s187 = smul.addr %s183, 2
          %s188 = smul.addr %s187, 64
          %s189 = scalar_lea.hbm %s1, %s188
          %s191 = sshll.u32 %s182, 4
          %s192 = int_to_ptr.vmem [resolvable:$true] %s191
          %194 = dma.hbm_to_vmem [thread:$0]  %s189, 128, %s192, %s179
        $region24: #{tpu_custom_call.1} parent=15 // pred_fallthru
          _
      $region16: #{tpu_custom_call.1} parent=5 // pred_fallthru
        _
      %p195 = scmp.le.s32.totalorder 1, %s16
      %p196 = scmp.lt.s32.totalorder %s16, 3
      %p197 = pnand %p195, %p196
      %p198 = pneg %p197
      // Predicated region
      $region25: #{tpu_custom_call.1} parent=5 // pred_check
        _
      $region26: #{tpu_custom_call.1} parent=5 // pred_check_branch
        %200 = sbr.rel (%p197) target = $region28
      $region27: #{tpu_custom_call.1} parent=5 // pred_region
        %s201 = ssub.s32 %s16, 1
        %s202 = sand.u32 %s43, 1
        %s203 = scalar_lea.sflag [#allocation7], %s202
        %s204 = sand.u32 %s43, 1
        %s205 = smul.addr %s204, 8
        %s206 = scalar_lea.vmem [#allocation6], %s205
        // Predicated region
        $region29: #{tpu_custom_call.1} parent=27 // pred_check
          %p207 = pneg %p56
        $region30: #{tpu_custom_call.1} parent=27 // pred_check_branch
          %209 = sbr.rel (%p207) target = $region32
        $region31: #{tpu_custom_call.1} parent=27 // pred_region
          %210 = dma.done %s203, 128
        $region32: #{tpu_custom_call.1} parent=27 // pred_fallthru
          _
        %s211 = sand.u32 %s71, 1
        %s212 = scalar_lea.sflag [#allocation9], %s211
        %s213 = sand.u32 %s71, 1
        %s214 = smul.addr %s213, 8
        %s215 = scalar_lea.vmem [#allocation8], %s214
        // Predicated region
        $region33: #{tpu_custom_call.1} parent=27 // pred_check
          %p216 = pneg %p84
        $region34: #{tpu_custom_call.1} parent=27 // pred_check_branch
          %218 = sbr.rel (%p216) target = $region36
        $region35: #{tpu_custom_call.1} parent=27 // pred_region
          %219 = dma.done %s212, 128
        $region36: #{tpu_custom_call.1} parent=27 // pred_fallthru
          _
        %s220 = sand.u32 %s43, 1
        %s221 = scalar_lea.sflag [#allocation7], %s220
        %s222 = sand.u32 %s43, 1
        %s223 = smul.addr %s222, 8
        %s224 = scalar_lea.vmem [#allocation6], %s223
        %p225 = pneg %p56
        %p226 = pneg %p53
        %s227 = sand.u32 %s71, 1
        %s228 = scalar_lea.sflag [#allocation9], %s227
        %s229 = sand.u32 %s71, 1
        %s230 = smul.addr %s229, 8
        %s231 = scalar_lea.vmem [#allocation8], %s230
        %p232 = pneg %p84
        %p233 = pneg %p81
        %p234 = pneg %p110
        %p235 = pneg %p107
        %p236 = scmp.lt.s32.totalorder %s25, 1
        %s237 = scalar_select %p236, %s25, 1
        %s238 = smul.addr %s237, 2
        %s239 = smul.addr %s238, 4
        %s240 = scalar_lea.vmem %s2, %s239
        %p241 = pneg %p136
        %p242 = pneg %p133
        %p243 = scmp.lt.s32.totalorder %s25, 1
        %s244 = scalar_select %p243, %s25, 1
        %s245 = smul.addr %s244, 2
        %s246 = smul.addr %s245, 4
        %s247 = scalar_lea.vmem %s3, %s246
        %s248 = sadd.s32 %s25, %s26
        %s249 = sadd.s32 %s25, %s26
        %p250 = scmp.lt.s32.totalorder %s25, 1
        %s251 = scalar_select %p250, %s25, 1
        %s252 = smul.addr %s251, 2
        %s253 = smul.addr %s252, 4
        %s254 = scalar_lea.vmem %s2, %s253
        %p255 = scmp.lt.s32.totalorder %s25, 1
        %s256 = scalar_select %p255, %s25, 1
        %s257 = smul.addr %s256, 2
        %s258 = smul.addr %s257, 4
        %s259 = scalar_lea.vmem %s3, %s258
        %p260 = scmp.eq.s32.totalorder %s26, 0
        // Predicated region
        $region37: #{tpu_custom_call.1} parent=27 // pred_check
          %p261 = pneg %p260
        $region38: #{tpu_custom_call.1} parent=27 // pred_check_branch
          %263 = sbr.rel (%p261) target = $region40
        $region39: #{tpu_custom_call.1} parent=27 // pred_region
          %264 = vst [vmem:[#allocation2] sm:$0xff] 0.0
          %265 = vst [vmem:[#allocation3] sm:$0xff] 0.0
          %266 = vst [vmem:[#allocation4] sm:$0xff] 0
          %267 = vst [vmem:[#allocation5] sm:$0xff] 0
        $region40: #{tpu_custom_call.1} parent=27 // pred_fallthru
          _
        %v268 = vld [vmem:[%s206] sm:$0xff]
        %v269 = vld [vmem:[%s215] sm:$0xff]
        %vm270 = vcmp.ne.f32.partialorder %v268, %v268
        %vm271 = vcmp.ne.f32.partialorder %v269, %v269
        %v272 = vsel %vm270, 0.0, %v268
        %v273 = vsel %vm271, 0.0, %v269
        %v274 = vld [vmem:[#allocation2] sm:$0xff]
        %v275 = vmul.f32 %v272, %v272
        %v276 = vadd.f32 %v275, 0.0
        %v277 = vadd.f32 %v274, %v276
        %278 = vst [vmem:[#allocation2] sm:$0xff] %v277
        %v279 = vld [vmem:[#allocation3] sm:$0xff]
        %v280 = vmul.f32 %v273, %v273
        %v281 = vadd.f32 %v280, 0.0
        %v282 = vadd.f32 %v279, %v281
        %283 = vst [vmem:[#allocation3] sm:$0xff] %v282
        %v284 = vld [vmem:[#allocation4] sm:$0xff]
        %vm285 = vmxor %vm270, 1
        %v286 = vsel %vm285, 1, 0
        %v287 = vadd.s32 %v284, %v286
        %288 = vst [vmem:[#allocation4] sm:$0xff] %v287
        %v289 = vld [vmem:[#allocation5] sm:$0xff]
        %vm290 = vmxor %vm271, 1
        %v291 = vsel %vm290, 1, 0
        %v292 = vadd.s32 %v289, %v291
        %293 = vst [vmem:[#allocation5] sm:$0xff] %v292
        // Predicated region
        $region41: #{tpu_custom_call.1} parent=27 // pred_check
          %p294 = pneg %p260
        $region42: #{tpu_custom_call.1} parent=27 // pred_check_branch
          %296 = sbr.rel (%p294) target = $region44
        $region43: #{tpu_custom_call.1} parent=27 // pred_region
          %v297 = vld [vmem:[#allocation2] sm:$0xff]
          %v299 = vcombine.high %v297, %v297
          %vm301 = vcmask 1043456
          %v302 = vsel %vm301, %v297, 0.0
          %v303 = vsel %vm301, %v299, 0.0
          %v304 = vadd.f32 %v302, %v303
          %305 = vadd.xlane.f32.xlu0 %v304
          %v306 = vpop.xlane.xlu0 %305
          %vm307 = vcmask 3072
          %308 = vst.msk [vmem:[%s254] sm:$0xf] %vm307, %v306
          %v309 = vld [vmem:[#allocation3] sm:$0xff]
          %v311 = vcombine.high %v309, %v309
          %v313 = vsel %vm301, %v309, 0.0
          %v314 = vsel %vm301, %v311, 0.0
          %v315 = vadd.f32 %v313, %v314
          %316 = vadd.xlane.f32.xlu0 %v315
          %v317 = vpop.xlane.xlu0 %316
          %s318 = scalar_lea.vmem %s254, 4
          %319 = vst.msk [vmem:[%s318] sm:$0xf] %vm307, %v317
          %v320 = vld [vmem:[#allocation4] sm:$0xff]
          %v321 = vcombine.high %v320, %v320
          %v322 = vsel %vm301, %v320, 0
          %v323 = vsel %vm301, %v321, 0
          %v324 = vadd.s32 %v322, %v323
          %v325 = vand.u32 %v324, 65535
          %v326 = vshrl.u32 %v324, 16
          %v327 = vcvt.s32.f32 %v325
          %v328 = vcvt.s32.f32 %v326
          %329 = vadd.xlane.f32.xlu0 %v327
          %v330 = vpop.xlane.xlu0 %329
          %331 = vadd.xlane.f32.xlu0 %v328
          %v332 = vpop.xlane.xlu0 %331
          %v333 = vcvt.f32.s32 %v330
          %v334 = vcvt.f32.s32 %v332
          %v335 = vshll.u32 %v334, 16
          %v336 = vadd.s32 %v335, %v333
          %337 = vst.msk [vmem:[%s259] sm:$0xf] %vm307, %v336
          %v338 = vld [vmem:[#allocation5] sm:$0xff]
          %v339 = vcombine.high %v338, %v338
          %v340 = vsel %vm301, %v338, 0
          %v341 = vsel %vm301, %v339, 0
          %v342 = vadd.s32 %v340, %v341
          %v343 = vand.u32 %v342, 65535
          %v344 = vshrl.u32 %v342, 16
          %v345 = vcvt.s32.f32 %v343
          %v346 = vcvt.s32.f32 %v344
          %347 = vadd.xlane.f32.xlu0 %v345
          %v348 = vpop.xlane.xlu0 %347
          %349 = vadd.xlane.f32.xlu0 %v346
          %v350 = vpop.xlane.xlu0 %349
          %v351 = vcvt.f32.s32 %v348
          %v352 = vcvt.f32.s32 %v350
          %v353 = vshll.u32 %v352, 16
          %v354 = vadd.s32 %v353, %v351
          %s355 = scalar_lea.vmem %s259, 4
          %356 = vst.msk [vmem:[%s355] sm:$0xf] %vm307, %v354
        $region44: #{tpu_custom_call.1} parent=27 // pred_fallthru
          _
        %p357 = scmp.lt.s32.totalorder %s25, 1
        %s358 = scalar_select %p357, %s25, 1
        %s359 = smul.addr %s358, 2
        %s360 = smul.addr %s359, 4
        %s361 = scalar_lea.vmem %s2, %s360
        %p362 = scmp.lt.s32.totalorder %s25, 1
        %s363 = scalar_select %p362, %s25, 1
        %s364 = smul.addr %s363, 2
        %s365 = smul.addr %s364, 4
        %s366 = scalar_lea.vmem %s3, %s365
        // Predicated region
        $region45: #{tpu_custom_call.1} parent=27 // pred_check
          %p367 = pneg %p107
        $region46: #{tpu_custom_call.1} parent=27 // pred_check_branch
          %369 = sbr.rel (%p367) target = $region48
        $region47: #{tpu_custom_call.1} parent=27 // pred_region
          _
        $region48: #{tpu_custom_call.1} parent=27 // pred_fallthru
          _
        // Predicated region
        $region49: #{tpu_custom_call.1} parent=27 // pred_check
          %p370 = pneg %p133
        $region50: #{tpu_custom_call.1} parent=27 // pred_check_branch
          %372 = sbr.rel (%p370) target = $region52
        $region51: #{tpu_custom_call.1} parent=27 // pred_region
          _
        $region52: #{tpu_custom_call.1} parent=27 // pred_fallthru
          _
      $region28: #{tpu_custom_call.1} parent=5 // pred_fallthru
        _
      %p373 = scmp.le.s32.totalorder 2, %s16
      // Predicated region
      $region53: #{tpu_custom_call.1} parent=5 // pred_check
        %p374 = pneg %p373
      $region54: #{tpu_custom_call.1} parent=5 // pred_check_branch
        %376 = sbr.rel (%p374) target = $region56
      $region55: #{tpu_custom_call.1} parent=5 // pred_region
        %s377 = ssub.s32 %s16, 2
        // Predicated region
        $region57: #{tpu_custom_call.1} parent=55 // pred_check
          %p378 = pneg %p113
        $region58: #{tpu_custom_call.1} parent=55 // pred_check_branch
          %380 = sbr.rel (%p378) target = $region60
        $region59: #{tpu_custom_call.1} parent=55 // pred_region
          %p381 = scmp.lt.s32.totalorder %s27, 1
          %s382 = scalar_select %p381, %s27, 1
          %s383 = smul.addr %s382, 2
          %s384 = smul.addr %s383, 4
          %s385 = scalar_lea.vmem %s2, %s384
        $region60: #{tpu_custom_call.1} parent=55 // pred_fallthru
          _
        // Predicated region
        $region61: #{tpu_custom_call.1} parent=55 // pred_check
          %p386 = pneg %p139
        $region62: #{tpu_custom_call.1} parent=55 // pred_check_branch
          %388 = sbr.rel (%p386) target = $region64
        $region63: #{tpu_custom_call.1} parent=55 // pred_region
          %p389 = scmp.lt.s32.totalorder %s27, 1
          %s390 = scalar_select %p389, %s27, 1
          %s391 = smul.addr %s390, 2
          %s392 = smul.addr %s391, 4
          %s393 = scalar_lea.vmem %s3, %s392
        $region64: #{tpu_custom_call.1} parent=55 // pred_fallthru
          _
      $region56: #{tpu_custom_call.1} parent=5 // pred_fallthru
        _
    $region6: #{tpu_custom_call.1} parent=1 // loop_footer
      %s20 = sadd.s32 1, %s16
    $region7: #{tpu_custom_call.1} parent=1 // loop_footer_branch
      %15 = sbr.rel target = $region3
    $region8: #{tpu_custom_call.1} parent=1 // loop_exit
      _
    %394 = vsyncpa [#allocation7], 1
    %s395 = scalar_lea.sflag [#allocation7], 1
    %396 = vsyncpa %s395, 1
    %397 = vsyncpa [#allocation9], 1
    %s398 = scalar_lea.sflag [#allocation9], 1
    %399 = vsyncpa %s398, 1

</llo_original>
